<compile_context>
chip_gen: v7x
topology: tpu7x:2x2x1
jax: 0.10.0
libtpu: 0.0.40
codegen_flags: <defaults>
</compile_context>

<pallas_src>
import functools

import jax
import jax.numpy as jnp
from jax.experimental import pallas as pl
from jax.experimental.pallas import tpu as pltpu

LANE = 128
SUBLANE = 8
SLAB_ALIGN = 16          # bf16 slab: keep row blocks a multiple of the bf16 tile


# --------------------------------------------------------------------------- #
# Pass 1: ReLU + conv (single lane-dense matmul) + per-tile BN partial sums
# --------------------------------------------------------------------------- #
def relu_conv_stats_kernel(x_ref, r_ref, slab_ref, stats_ref, *, K, stride, Ho):
    """One batch tile.

    x_ref:     (TB, S, Hpp, WpCp)   bf16  phase-grouped, zero/lane-padded input
    r_ref:     (K*WpCp, L)          bf16  Toeplitz-expanded conv weights
    slab_ref:  (TB*Ho, L)           bf16  lane-dense conv output slab
    stats_ref: (1, 2, L)            f32   this tile's [sum; sum of squares]
    """
    TB = x_ref.shape[0]
    WpCp = x_ref.shape[-1]

    # ReLU once on the whole tile; the K row bands below overlap, so hoisting
    # avoids ~K x the VPU max work (matters most on v5e: no bf16 VPU path).
    xt = jnp.maximum(x_ref[...], 0)

    # Gather the K row bands each output row needs.  Vertical stride was folded
    # into the wrapper's phase-grouped layout, so every band is a contiguous
    # row slice; WpCp is a multiple of 128, so the lane concat is free stacking.
    pieces = []
    for ky in range(K):
        band = xt[:, ky % stride, ky // stride: ky // stride + Ho, :]
        pieces.append(band.reshape(TB * Ho, WpCp))
    lhs = jnp.concatenate(pieces, axis=-1)                       # (rows, K*WpCp)

    # One MXU matmul: bf16 inputs, f32 accumulation, lane-dense output slab.
    conv = jnp.dot(lhs, r_ref[...], preferred_element_type=jnp.float32)
    slab_ref[...] = conv.astype(slab_ref.dtype)

    # Per-tile BN partials (reduced in the wrapper) -> grid axis stays "parallel".
    ssum = jnp.sum(conv, axis=0, keepdims=True)                  # (1, L)
    ssq = jnp.sum(conv * conv, axis=0, keepdims=True)            # (1, L)
    stats_ref[0, :, :] = jnp.concatenate([ssum, ssq], axis=0)    # (2, L)


# --------------------------------------------------------------------------- #
# Pass 2: lane-dense elementwise BatchNorm apply
# --------------------------------------------------------------------------- #
def bn_apply_kernel(slab_ref, scale_ref, shift_ref, o_ref):
    o_ref[...] = slab_ref[...].astype(jnp.float32) * scale_ref[...] + shift_ref[...]


# --------------------------------------------------------------------------- #
# Tiling helpers
# --------------------------------------------------------------------------- #
def _round_up(x, m):
    return ((x + m - 1) // m) * m


def _vmem_capacity_bytes():
    try:
        return int(pltpu.get_tpu_info().vmem_capacity_bytes)
    except Exception:
        return 64 << 20          # conservative default: v7x per-TensorCore VMEM


def _pick_batch_tile(N, Ho, x_bytes_per_n, slab_bytes_per_n, fixed_bytes, budget):
    """Largest TB dividing N, row-aligned, whose double-buffered blocks fit the
    VMEM budget; prefers >=2 grid steps (v7x megacore) when tiles stay large."""
    def fits(tb):
        return (2 * tb * (x_bytes_per_n + slab_bytes_per_n) + fixed_bytes) <= budget

    divisors = [d for d in range(1, N + 1) if N % d == 0]
    cands = [d for d in divisors
             if ((d * Ho) % SLAB_ALIGN == 0 or d == N) and fits(d)]
    if not cands:
        cands = [d for d in divisors if fits(d)] or [1]
    tb = max(cands)
    if tb == N and N % 2 == 0:
        half = N // 2
        if half in cands and half * Ho >= 512:
            tb = half                      # keep both v7x TensorCores busy
    return tb


def _pick_row_tile(rows, cap):
    """Largest row tile <= cap (never above it); prefers a dividing multiple of 16."""
    cap = max(SLAB_ALIGN, (cap // SLAB_ALIGN) * SLAB_ALIGN)
    if rows <= cap:
        return rows
    best = 0
    for tr in range(SLAB_ALIGN, cap + 1, SLAB_ALIGN):
        if rows % tr == 0:
            best = tr
    # Non-dividing fallback stays <= cap; the grid uses pl.cdiv and the last
    # (partial) block is handled by the BlockSpec pipeline.
    return best if best else cap


# --------------------------------------------------------------------------- #
# Wrapper: NCHW in/out, PyTorch OIHW weights
# --------------------------------------------------------------------------- #
def relu_conv_bn(x_nchw, w_oihw, gamma, beta, *, stride=1, padding=1, eps=1e-5):
    N, Cin, H, W = x_nchw.shape
    Cout, _, K, _ = w_oihw.shape
    s = stride
    Ho = (H + 2 * padding - K) // s + 1
    Wo = (W + 2 * padding - K) // s + 1
    Hp, Wp = H + 2 * padding, W + 2 * padding
    L = Wo * Cout                          # lane-dense slab width
    WpC = Wp * Cin
    WpCp = _round_up(WpC, LANE)            # lane-aligned band width
    Hpp = -(-Hp // s)                      # rows per vertical-stride phase

    # ---- glue (XLA): layout, zero pad, lane pad, stride phase-group, bf16 ----
    # TODO(synk): fold the NCHW->NHWC transpose + zero pad of x into pass 1
    # (masked halo writes) to drop one full HBM round trip of x.
    x = jnp.transpose(x_nchw, (0, 2, 3, 1)).astype(jnp.bfloat16)          # NHWC
    x = jnp.pad(x, ((0, 0), (padding, padding), (padding, padding), (0, 0)))
    x = x.reshape(N, Hp, WpC)
    x = jnp.pad(x, ((0, 0), (0, s * Hpp - Hp), (0, WpCp - WpC)))
    # Group rows by (row % stride) so in-kernel band reads are contiguous.
    x = x.reshape(N, Hpp, s, WpCp).transpose(0, 2, 1, 3)                  # (N,s,Hpp,WpCp)

    # Toeplitz-expand weights so the conv is ONE matmul with lane-dense output:
    #   R[ky*WpCp + xw*Cin + ci, wo*Cout + c] = W[ky, xw - wo*stride, ci, c]
    w_khwc = jnp.transpose(w_oihw, (2, 3, 1, 0)).astype(jnp.float32)      # (K,K,Cin,Cout)
    xw = jnp.arange(Wp)[:, None]
    wo = jnp.arange(Wo)[None, :]
    kx = xw - wo * s                                                      # (Wp, Wo)
    valid = (kx >= 0) & (kx < K)
    g = w_khwc[:, jnp.clip(kx, 0, K - 1), :, :]                           # (K,Wp,Wo,Cin,Cout)
    g = g * valid[None, :, :, None, None]
    r_mat = jnp.transpose(g, (0, 1, 3, 2, 4)).reshape(K, WpC, L)
    r_mat = jnp.pad(r_mat, ((0, 0), (0, WpCp - WpC), (0, 0)))
    r_mat = r_mat.reshape(K * WpCp, L).astype(jnp.bfloat16)

    # ---- per-chip VMEM budget -> batch tile + vmem limit ----------------------
    vmem_cap = _vmem_capacity_bytes()
    budget = max(min(vmem_cap - (16 << 20), 96 << 20), 32 << 20)
    w_bytes = r_mat.size * 2
    fixed = w_bytes + 2 * (2 * L * 4) + (2 << 20)     # weights + stats + slack
    x_per_n = s * Hpp * WpCp * 2                      # bf16 input tile bytes / batch
    slab_per_n = Ho * L * 2                           # bf16 slab tile bytes / batch
    TB = _pick_batch_tile(N, Ho, x_per_n, slab_per_n, fixed, budget)
    G = N // TB
    needed = 2 * TB * (x_per_n + slab_per_n) + fixed
    vmem_limit = int(min(budget, max(32 << 20, needed + (16 << 20))))

    # ---- pass 1: ReLU + conv + per-tile BN partial sums ------------------------
    kern1 = functools.partial(relu_conv_stats_kernel, K=K, stride=s, Ho=Ho)
    cost = pl.CostEstimate(
        flops=2 * N * Ho * (K * WpCp) * L,
        transcendentals=0,
        bytes_accessed=x.size * 2 + r_mat.size * 2 + N * Ho * L * 2 + G * 2 * L * 4)

    def _pass1(single_buffer_weights):
        if single_buffer_weights:
            # Constant-index resident block: one VMEM buffer is enough.
            w_spec = pl.BlockSpec((K * WpCp, L), lambda i: (0, 0),
                                  pipeline_mode=pl.Buffered(1))
        else:
            w_spec = pl.BlockSpec((K * WpCp, L), lambda i: (0, 0))
        return pl.pallas_call(
            kern1,
            grid=(G,),
            in_specs=[
                pl.BlockSpec((TB, s, Hpp, WpCp), lambda i: (i, 0, 0, 0)),
                w_spec,
            ],
            out_specs=(
                pl.BlockSpec((TB * Ho, L), lambda i: (i, 0)),
                pl.BlockSpec((1, 2, L), lambda i: (i, 0, 0)),
            ),
            out_shape=(
                jax.ShapeDtypeStruct((N * Ho, L), jnp.bfloat16),
                jax.ShapeDtypeStruct((G, 2, L), jnp.float32),
            ),
            compiler_params=pltpu.CompilerParams(
                dimension_semantics=("parallel",),        # per-tile stats -> no carry
                vmem_limit_bytes=vmem_limit),
            cost_estimate=cost,
        )(x, r_mat)

    try:
        slab, partials = _pass1(True)
    except Exception:   # jax without BlockSpec pipeline_mode / single buffering
        slab, partials = _pass1(False)

    # ---- finalize stats (tiny, XLA): per-channel scale & shift ----------------
    count = N * Ho * Wo
    stats = partials.sum(axis=0)                                  # (2, L)
    sums = stats[0].reshape(Wo, Cout).sum(axis=0)
    sumsq = stats[1].reshape(Wo, Cout).sum(axis=0)
    mean = sums / count
    # Training-mode (biased) variance via E[x^2]-E[x]^2, all in f32.
    # TODO(synk): switch to Welford/M2 partials if |mean| >> std at large N*H*W.
    var = jnp.maximum(sumsq / count - mean * mean, 0.0)
    inv = jax.lax.rsqrt(var + eps)
    scale = gamma.astype(jnp.float32) * inv
    shift = beta.astype(jnp.float32) - mean * scale
    scale_row = jnp.tile(scale, Wo).reshape(1, L)                 # lane = wo*Cout + c
    shift_row = jnp.tile(shift, Wo).reshape(1, L)

    # ---- pass 2: lane-dense elementwise normalize ------------------------------
    rows = N * Ho
    # Pure HBM bandwidth: bf16 in + f32 out, both double-buffered.
    row_cap = max(SLAB_ALIGN, min(4096, budget // (L * (2 + 4) * 2)))
    TR = _pick_row_tile(rows, row_cap)
    out_slab = pl.pallas_call(
        bn_apply_kernel,
        grid=(pl.cdiv(rows, TR),),
        in_specs=[
            pl.BlockSpec((TR, L), lambda i: (i, 0)),
            pl.BlockSpec((1, L), lambda i: (0, 0)),
            pl.BlockSpec((1, L), lambda i: (0, 0)),
        ],
        out_specs=pl.BlockSpec((TR, L), lambda i: (i, 0)),
        out_shape=jax.ShapeDtypeStruct((rows, L), jnp.float32),
        compiler_params=pltpu.CompilerParams(
            dimension_semantics=("parallel",),
            vmem_limit_bytes=vmem_limit),
    )(slab, scale_row, shift_row)

    # TODO(synk): drop this transpose if the consumer can take NHWC directly.
    out_nhwc = out_slab.reshape(N, Ho, Wo, Cout)
    return jnp.transpose(out_nhwc, (0, 3, 1, 2))                  # NCHW


# --------------------------------------------------------------------------- #
# Pure-JAX reference matching PyTorch training-mode ReLUConvBN
# --------------------------------------------------------------------------- #
def ref_forward(x_nchw, w_oihw, gamma, beta, *, stride, padding, eps=1e-5):
    xr = jnp.maximum(x_nchw, 0.0)
    conv = jax.lax.conv_general_dilated(
        xr, w_oihw, window_strides=(stride, stride),
        padding=((padding, padding), (padding, padding)),
        dimension_numbers=("NCHW", "OIHW", "NCHW"))
    mean = conv.mean(axis=(0, 2, 3), keepdims=True)
    var = jnp.mean((conv - mean) ** 2, axis=(0, 2, 3), keepdims=True)
    g = gamma.reshape(1, -1, 1, 1)
    b = beta.reshape(1, -1, 1, 1)
    return g * (conv - mean) * jax.lax.rsqrt(var + eps) + b


if __name__ == "__main__":
    # ReLUConvBN(C_in=4, C_out=8, kernel_size=3, stride=1, padding=1)
    N, C_in, H, W = 2, 4, 16, 16
    C_out, K, stride, padding = 8, 3, 1, 1

    key = jax.random.PRNGKey(0)
    kx_, kw_ = jax.random.split(key)
    x = jax.random.normal(kx_, (N, C_in, H, W), dtype=jnp.float32)
    w = 0.1 * jax.random.normal(kw_, (C_out, C_in, K, K), dtype=jnp.float32)
    gamma = jnp.ones((C_out,), dtype=jnp.float32)    # BatchNorm2d affine init
    beta = jnp.zeros((C_out,), dtype=jnp.float32)

    out = relu_conv_bn(x, w, gamma, beta, stride=stride, padding=padding)
    out = jax.block_until_ready(out)
    assert out.shape == (N, C_out, H, W), out.shape

    # Tight-ish check vs a reference fed the same bf16-rounded inputs (isolates
    # the kernel math; tolerance accounts for the bf16 slab storage), plus a
    # loose check vs the pure-f32 module semantics.
    xb = x.astype(jnp.bfloat16).astype(jnp.float32)
    wb = w.astype(jnp.bfloat16).astype(jnp.float32)
    ref_bf16 = ref_forward(xb, wb, gamma, beta, stride=stride, padding=padding)
    ref_f32 = ref_forward(x, w, gamma, beta, stride=stride, padding=padding)
    assert jnp.allclose(out, ref_bf16, atol=3e-2, rtol=3e-2), \
        float(jnp.max(jnp.abs(out - ref_bf16)))
    assert jnp.allclose(out, ref_f32, atol=1e-1, rtol=1e-1), \
        float(jnp.max(jnp.abs(out - ref_f32)))

    print("KERNEL_OK")
</pallas_src>

<mosaic_0001>
module attributes {stable_mosaic.version = 11 : i64} {
  func.func @relu_conv_stats_kernel(%arg0: i32, %arg1: memref<2x1x18x128xbf16, #tpu.memory_space<vmem>>, %arg2: memref<384x128xbf16, #tpu.memory_space<vmem>>, %arg3: memref<32x128xbf16, #tpu.memory_space<vmem>>, %arg4: memref<1x2x128xf32, #tpu.memory_space<vmem>>) attributes {dimension_semantics = [#tpu.dimension_semantics<parallel>], iteration_bounds = array<i64: 1>, scalar_prefetch = 0 : i64, scratch_operands = 0 : i64, tpu.core_type = #tpu.core_type<tc>, window_params = [{transform_indices = @transform_0, window_bounds = array<i64: 2, 1, 18, 128>}, {pipeline_mode = #tpu.pipeline_mode<synchronous>, transform_indices = @transform_1, window_bounds = array<i64: 384, 128>}, {transform_indices = @transform_2, window_bounds = array<i64: 32, 128>}, {transform_indices = @transform_3, window_bounds = array<i64: 1, 2, 128>}]} {
    %c0 = arith.constant 0 : index
    %c0_0 = arith.constant 0 : index
    %c0_1 = arith.constant 0 : index
    %c0_2 = arith.constant 0 : index
    %0 = vector.load %arg1[%c0, %c0_0, %c0_1, %c0_2] : memref<2x1x18x128xbf16, #tpu.memory_space<vmem>>, vector<2x1x18x128xbf16>
    %cst = arith.constant 0.000000e+00 : bf16
    %1 = vector.broadcast %cst : bf16 to vector<2x1x18x128xbf16>
    %2 = arith.maximumf %0, %1 : vector<2x1x18x128xbf16>
    %3 = vector.extract_strided_slice %2 {offsets = [0, 0, 0, 0], sizes = [2, 1, 16, 128], strides = [1, 1, 1, 1]} : vector<2x1x18x128xbf16> to vector<2x1x16x128xbf16>
    %4 = vector.shape_cast %3 : vector<2x1x16x128xbf16> to vector<2x16x128xbf16>
    %5 = vector.shape_cast %4 : vector<2x16x128xbf16> to vector<32x128xbf16>
    %6 = vector.extract_strided_slice %2 {offsets = [0, 0, 1, 0], sizes = [2, 1, 16, 128], strides = [1, 1, 1, 1]} : vector<2x1x18x128xbf16> to vector<2x1x16x128xbf16>
    %7 = vector.shape_cast %6 : vector<2x1x16x128xbf16> to vector<2x16x128xbf16>
    %8 = vector.shape_cast %7 : vector<2x16x128xbf16> to vector<32x128xbf16>
    %9 = vector.extract_strided_slice %2 {offsets = [0, 0, 2, 0], sizes = [2, 1, 16, 128], strides = [1, 1, 1, 1]} : vector<2x1x18x128xbf16> to vector<2x1x16x128xbf16>
    %10 = vector.shape_cast %9 : vector<2x1x16x128xbf16> to vector<2x16x128xbf16>
    %11 = vector.shape_cast %10 : vector<2x16x128xbf16> to vector<32x128xbf16>
    %12 = tpu.concatenate %5, %8, %11 in 1 : vector<32x128xbf16>, vector<32x128xbf16>, vector<32x128xbf16> -> vector<32x384xbf16>
    %c0_3 = arith.constant 0 : index
    %c0_4 = arith.constant 0 : index
    %13 = vector.load %arg2[%c0_3, %c0_4] : memref<384x128xbf16, #tpu.memory_space<vmem>>, vector<384x128xbf16>
    %cst_5 = arith.constant dense<0.000000e+00> : vector<32x128xf32>
    %14 = tpu.matmul %12, %13, %cst_5 {dimension_numbers = #tpu.dot_dimension_numbers<[1], [0], [0], [1], [0, 0, 1, 1], [], []>} : vector<32x384xbf16>, vector<384x128xbf16>, vector<32x128xf32> -> vector<32x128xf32>
    %15 = arith.truncf %14 : vector<32x128xf32> to vector<32x128xbf16>
    %c0_6 = arith.constant 0 : index
    %c0_7 = arith.constant 0 : index
    %16 = vector.load %arg3[%c0_6, %c0_7] : memref<32x128xbf16, #tpu.memory_space<vmem>>, vector<32x128xbf16>
    tpu.vector_store %arg3[%c0_6, %c0_7], %15 {strides = array<i32>} : memref<32x128xbf16, #tpu.memory_space<vmem>>, vector<32x128xbf16>,
    %cst_8 = arith.constant dense<0.000000e+00> : vector<128xf32>
    %17 = vector.multi_reduction <add>, %14, %cst_8 [0] : vector<32x128xf32> to vector<128xf32>
    %18 = vector.shape_cast %17 : vector<128xf32> to vector<1x128xf32>
    %19 = arith.mulf %14, %14 : vector<32x128xf32>
    %cst_9 = arith.constant dense<0.000000e+00> : vector<128xf32>
    %20 = vector.multi_reduction <add>, %19, %cst_9 [0] : vector<32x128xf32> to vector<128xf32>
    %21 = vector.shape_cast %20 : vector<128xf32> to vector<1x128xf32>
    %22 = tpu.concatenate %18, %21 in 0 : vector<1x128xf32>, vector<1x128xf32> -> vector<2x128xf32>
    %c0_10 = arith.constant 0 : index
    %c0_11 = arith.constant 0 : index
    %c0_12 = arith.constant 0 : index
    %23 = vector.load %arg4[%c0_10, %c0_11, %c0_12] : memref<1x2x128xf32, #tpu.memory_space<vmem>>, vector<1x2x128xf32>
    %24 = vector.shape_cast %23 : vector<1x2x128xf32> to vector<2x128xf32>
    %25 = vector.shape_cast %22 : vector<2x128xf32> to vector<1x2x128xf32>
    tpu.vector_store %arg4[%c0_10, %c0_11, %c0_12], %25 {strides = array<i32>} : memref<1x2x128xf32, #tpu.memory_space<vmem>>, vector<1x2x128xf32>,
    return
  }
  func.func @transform_0(%arg0: i32) -> (i32, i32, i32, i32) {
    %c0_i32 = arith.constant 0 : i32
    %c0_i32_0 = arith.constant 0 : i32
    %c0_i32_1 = arith.constant 0 : i32
    %c0_i32_2 = arith.constant 0 : i32
    return %arg0, %c0_i32, %c0_i32_0, %c0_i32_1 : i32, i32, i32, i32
  }
  func.func @transform_1(%arg0: i32) -> (i32, i32) {
    %c0_i32 = arith.constant 0 : i32
    %c0_i32_0 = arith.constant 0 : i32
    %c0_i32_1 = arith.constant 0 : i32
    return %c0_i32, %c0_i32_0 : i32, i32
  }
  func.func @transform_2(%arg0: i32) -> (i32, i32) {
    %c0_i32 = arith.constant 0 : i32
    %c0_i32_0 = arith.constant 0 : i32
    return %arg0, %c0_i32 : i32, i32
  }
  func.func @transform_3(%arg0: i32) -> (i32, i32, i32) {
    %c0_i32 = arith.constant 0 : i32
    %c0_i32_0 = arith.constant 0 : i32
    %c0_i32_1 = arith.constant 0 : i32
    return %arg0, %c0_i32, %c0_i32_0 : i32, i32, i32
  }
}

module attributes {stable_mosaic.version = 11 : i64} {
  func.func @relu_conv_stats_kernel(%arg0: i32, %arg1: memref<2x1x18x128xbf16, #tpu.memory_space<vmem>>, %arg2: memref<384x128xbf16, #tpu.memory_space<vmem>>, %arg3: memref<32x128xbf16, #tpu.memory_space<vmem>>, %arg4: memref<1x2x128xf32, #tpu.memory_space<vmem>>) attributes {dimension_semantics = [#tpu.dimension_semantics<parallel>], iteration_bounds = array<i64: 1>, scalar_prefetch = 0 : i64, scratch_operands = 0 : i64, tpu.core_type = #tpu.core_type<tc>, window_params = [{transform_indices = @transform_0, window_bounds = array<i64: 2, 1, 18, 128>}, {pipeline_mode = #tpu.pipeline_mode<synchronous>, transform_indices = @transform_1, window_bounds = array<i64: 384, 128>}, {transform_indices = @transform_2, window_bounds = array<i64: 32, 128>}, {transform_indices = @transform_3, window_bounds = array<i64: 1, 2, 128>}]} {
    %c0 = arith.constant 0 : index
    %c0_0 = arith.constant 0 : index
    %c0_1 = arith.constant 0 : index
    %c0_2 = arith.constant 0 : index
    %0 = vector.load %arg1[%c0, %c0_0, %c0_1, %c0_2] : memref<2x1x18x128xbf16, #tpu.memory_space<vmem>>, vector<2x1x18x128xbf16>
    %cst = arith.constant 0.000000e+00 : bf16
    %1 = vector.broadcast %cst : bf16 to vector<2x1x18x128xbf16>
    %2 = arith.maximumf %0, %1 : vector<2x1x18x128xbf16>
    %3 = vector.extract_strided_slice %2 {offsets = [0, 0, 0, 0], sizes = [2, 1, 16, 128], strides = [1, 1, 1, 1]} : vector<2x1x18x128xbf16> to vector<2x1x16x128xbf16>
    %4 = vector.shape_cast %3 : vector<2x1x16x128xbf16> to vector<2x16x128xbf16>
    %5 = vector.shape_cast %4 : vector<2x16x128xbf16> to vector<32x128xbf16>
    %6 = vector.extract_strided_slice %2 {offsets = [0, 0, 1, 0], sizes = [2, 1, 16, 128], strides = [1, 1, 1, 1]} : vector<2x1x18x128xbf16> to vector<2x1x16x128xbf16>
    %7 = vector.shape_cast %6 : vector<2x1x16x128xbf16> to vector<2x16x128xbf16>
    %8 = vector.shape_cast %7 : vector<2x16x128xbf16> to vector<32x128xbf16>
    %9 = vector.extract_strided_slice %2 {offsets = [0, 0, 2, 0], sizes = [2, 1, 16, 128], strides = [1, 1, 1, 1]} : vector<2x1x18x128xbf16> to vector<2x1x16x128xbf16>
    %10 = vector.shape_cast %9 : vector<2x1x16x128xbf16> to vector<2x16x128xbf16>
    %11 = vector.shape_cast %10 : vector<2x16x128xbf16> to vector<32x128xbf16>
    %12 = tpu.concatenate %5, %8, %11 in 1 : vector<32x128xbf16>, vector<32x128xbf16>, vector<32x128xbf16> -> vector<32x384xbf16>
    %c0_3 = arith.constant 0 : index
    %c0_4 = arith.constant 0 : index
    %13 = vector.load %arg2[%c0_3, %c0_4] : memref<384x128xbf16, #tpu.memory_space<vmem>>, vector<384x128xbf16>
    %cst_5 = arith.constant dense<0.000000e+00> : vector<32x128xf32>
    %14 = tpu.matmul %12, %13, %cst_5 {dimension_numbers = #tpu.dot_dimension_numbers<[1], [0], [0], [1], [0, 0, 1, 1], [], []>} : vector<32x384xbf16>, vector<384x128xbf16>, vector<32x128xf32> -> vector<32x128xf32>
    %15 = arith.truncf %14 : vector<32x128xf32> to vector<32x128xbf16>
    %c0_6 = arith.constant 0 : index
    %c0_7 = arith.constant 0 : index
    %16 = vector.load %arg3[%c0_6, %c0_7] : memref<32x128xbf16, #tpu.memory_space<vmem>>, vector<32x128xbf16>
    tpu.vector_store %arg3[%c0_6, %c0_7], %15 {strides = array<i32>} : memref<32x128xbf16, #tpu.memory_space<vmem>>, vector<32x128xbf16>,
    %cst_8 = arith.constant dense<0.000000e+00> : vector<128xf32>
    %17 = vector.multi_reduction <add>, %14, %cst_8 [0] : vector<32x128xf32> to vector<128xf32>
    %18 = vector.shape_cast %17 : vector<128xf32> to vector<1x128xf32>
    %19 = arith.mulf %14, %14 : vector<32x128xf32>
    %cst_9 = arith.constant dense<0.000000e+00> : vector<128xf32>
    %20 = vector.multi_reduction <add>, %19, %cst_9 [0] : vector<32x128xf32> to vector<128xf32>
    %21 = vector.shape_cast %20 : vector<128xf32> to vector<1x128xf32>
    %22 = tpu.concatenate %18, %21 in 0 : vector<1x128xf32>, vector<1x128xf32> -> vector<2x128xf32>
    %c0_10 = arith.constant 0 : index
    %c0_11 = arith.constant 0 : index
    %c0_12 = arith.constant 0 : index
    %23 = vector.load %arg4[%c0_10, %c0_11, %c0_12] : memref<1x2x128xf32, #tpu.memory_space<vmem>>, vector<1x2x128xf32>
    %24 = vector.shape_cast %23 : vector<1x2x128xf32> to vector<2x128xf32>
    %25 = vector.shape_cast %22 : vector<2x128xf32> to vector<1x2x128xf32>
    tpu.vector_store %arg4[%c0_10, %c0_11, %c0_12], %25 {strides = array<i32>} : memref<1x2x128xf32, #tpu.memory_space<vmem>>, vector<1x2x128xf32>,
    return
  }
  func.func @transform_0(%arg0: i32) -> (i32, i32, i32, i32) {
    %c0_i32 = arith.constant 0 : i32
    %c0_i32_0 = arith.constant 0 : i32
    %c0_i32_1 = arith.constant 0 : i32
    %c0_i32_2 = arith.constant 0 : i32
    return %arg0, %c0_i32, %c0_i32_0, %c0_i32_1 : i32, i32, i32, i32
  }
  func.func @transform_1(%arg0: i32) -> (i32, i32) {
    %c0_i32 = arith.constant 0 : i32
    %c0_i32_0 = arith.constant 0 : i32
    %c0_i32_1 = arith.constant 0 : i32
    return %c0_i32, %c0_i32_0 : i32, i32
  }
  func.func @transform_2(%arg0: i32) -> (i32, i32) {
    %c0_i32 = arith.constant 0 : i32
    %c0_i32_0 = arith.constant 0 : i32
    return %arg0, %c0_i32 : i32, i32
  }
  func.func @transform_3(%arg0: i32) -> (i32, i32, i32) {
    %c0_i32 = arith.constant 0 : i32
    %c0_i32_0 = arith.constant 0 : i32
    %c0_i32_1 = arith.constant 0 : i32
    return %arg0, %c0_i32, %c0_i32_0 : i32, i32, i32
  }
}

</mosaic_0001>

<llo_original>
// kernel: tpu_custom_call.1
$region0: #{tpu_custom_call.1}
  #allocation0 [shape = 'u32[]', space=smem, size = 0x4, offset = 0x4, fixed_abs, tag = 'smem constant byte address 0x4 - core index']
  #allocation1 [shape = 'u32[144,128]{1,0:T(1,128)}', space=vmem, size = 0x12000, scoped, tag = 'internal scratch']
  %s0 = inlined_call_operand.vmem [shape: bf16[2,1,18,128], index: 0, kind: input, shape index: {}]
  %s1 = inlined_call_operand.hbm [shape: bf16[384,128], index: 1, kind: input, shape index: {}]
  %s2 = inlined_call_operand.hbm [shape: bf16[32,128], index: 2, kind: output, shape index: {0}]
  %s3 = inlined_call_operand.hbm [shape: f32[1,2,128], index: 3, kind: output, shape index: {1}]
  %4 = xla_tuple %s2, %s3
  %s5 = sld [smem:[#allocation0]]
  $region30: #{tpu_custom_call.1} parent=0
    _
  %s7 = ssub.s32 1, %s5
  %s8 = scalar_select 0, %s7, %s5
  $region1: #{tpu_custom_call.1} parent=0
    #allocation2 [shape = 'u8[98304]{0}', space=vmem, size = 0x18000, scoped, tag = 'input window, operand 1, single buffered']
    #allocation3 [shape = 's32[1]{0}', space=sflag, size = 0x4, scoped, tag = 'scoped memory for tpu_custom_call.1']
    #allocation4 [shape = 's32[1]{0}', space=sflag, size = 0x4, scoped, tag = 'scoped memory for tpu_custom_call.1']
    #allocation5 [shape = 'u8[8192]{0}', space=vmem, size = 0x2000, scoped, tag = 'output window, operand 0, single buffered']
    #allocation6 [shape = 'u8[1024]{0}', space=vmem, size = 0x400, scoped, tag = 'output window, operand 1, single buffered']
    #allocation7 [shape = 's32[1]{0}', space=sflag, size = 0x4, scoped, tag = 'scoped memory for tpu_custom_call.1']
    %9 = vsyncpa [#allocation3], 0
    %10 = vsyncpa [#allocation4], 0
    %11 = vsyncpa [#allocation7], 0
    // Predicated region
    $region2: #{tpu_custom_call.1} parent=1 // pred_check
      _
    $region3: #{tpu_custom_call.1} parent=1 // pred_check_branch
      %13 = sbr.rel (0) target = $region5
    $region4: #{tpu_custom_call.1} parent=1 // pred_region
      _
    $region5: #{tpu_custom_call.1} parent=1 // pred_fallthru
      _
    // Predicated region
    $region6: #{tpu_custom_call.1} parent=1 // pred_check
      _
    $region7: #{tpu_custom_call.1} parent=1 // pred_check_branch
      %15 = sbr.rel (0) target = $region9
    $region8: #{tpu_custom_call.1} parent=1 // pred_region
      %s17 = ssub.s32 3072, 3072
      %18 = vsyncadd [#allocation3], %s17
      %s19 = sshll.u32 [#allocation2], 4
      %s20 = int_to_ptr.vmem [resolvable:$true] %s19
      %25 = dma.hbm_to_vmem [thread:$0]  %s1, 3072, %s20, [#allocation3], 64, 64, 4
    $region9: #{tpu_custom_call.1} parent=1 // pred_fallthru
      _
    // Predicated region
    $region10: #{tpu_custom_call.1} parent=1 // pred_check
      _
    $region11: #{tpu_custom_call.1} parent=1 // pred_check_branch
      %27 = sbr.rel (0) target = $region13
    $region12: #{tpu_custom_call.1} parent=1 // pred_region
      %28 = dma.done [#allocation3], 3072
    $region13: #{tpu_custom_call.1} parent=1 // pred_fallthru
      _
    %v30 = vld [vmem:[%s0] sm:$0xf]
    %v31 = vld [vmem:[%s0 + $0x4] sm:$0xf]
    %v32 = vld [vmem:[%s0 + $0x8] sm:$0x1]
    %v33 = vld [vmem:[%s0 + $0xc] sm:$0xf]
    %v34 = vld [vmem:[%s0 + $0x10] sm:$0xf]
    %v35 = vld [vmem:[%s0 + $0x14] sm:$0x1]
    %v36 = vmax.bf16 %v30, 0
    %v37 = vmax.bf16 %v31, 0
    %v38 = vmax.bf16 %v32, 0
    %v39 = vmax.bf16 %v33, 0
    %v40 = vmax.bf16 %v34, 0
    %v41 = vmax.bf16 %v35, 0
    %vm42 = vsmask.f32 3328
    %vm43 = vsmask.f32 7440
    %vm44 = vmor %vm42, %vm43
    %v46 = vshrl.u32 %v36, 16
    %v48 = vrot.slane %v46, 4
    %v49 = vshll.u32 %v36, 16
    %v51 = vrot.slane %v49, 5
    %v52 = vor.u32 %v48, %v51
    %v53 = vrot.slane %v52, 4
    %v55 = vshll.u32 %v37, 16
    %v57 = vrot.slane %v55, 5
    %v58 = vsel %vm44, %v53, %v57
    %v59 = vshrl.u32 %v37, 16
    %v61 = vrot.slane %v59, 4
    %v62 = vor.u32 %v61, %v57
    %v63 = vrot.slane %v62, 4
    %v65 = vshll.u32 %v38, 16
    %v67 = vrot.slane %v65, 5
    %v68 = vsel %vm44, %v63, %v67
    %v70 = vshrl.u32 %v39, 16
    %v72 = vrot.slane %v70, 4
    %v73 = vshll.u32 %v39, 16
    %v75 = vrot.slane %v73, 5
    %v76 = vor.u32 %v72, %v75
    %v77 = vrot.slane %v76, 4
    %v79 = vshll.u32 %v40, 16
    %v81 = vrot.slane %v79, 5
    %v82 = vsel %vm44, %v77, %v81
    %v83 = vshrl.u32 %v40, 16
    %v85 = vrot.slane %v83, 4
    %v86 = vor.u32 %v85, %v81
    %v87 = vrot.slane %v86, 4
    %v89 = vshll.u32 %v41, 16
    %v91 = vrot.slane %v89, 5
    %v92 = vsel %vm44, %v87, %v91
    %vm99 = vcmask 1042432
    %vm100 = vcmask 1046532
    %vm101 = vmor %vm99, %vm100
    %v102 = vrot.slane %v36, 5
    %v103 = vrot.slane %v102, 4
    %v104 = vrot.slane %v37, 5
    %v105 = vsel %vm101, %v103, %v104
    %v106 = vrot.slane %v104, 4
    %v107 = vrot.slane %v38, 5
    %v108 = vsel %vm101, %v106, %v107
    %v109 = vrot.slane %v39, 5
    %v110 = vrot.slane %v109, 4
    %v111 = vrot.slane %v40, 5
    %v112 = vsel %vm101, %v110, %v111
    %v113 = vrot.slane %v111, 4
    %v114 = vrot.slane %v41, 5
    %v115 = vsel %vm101, %v113, %v114
    %v116 = vunpack.c.l.b16 %v36
    %v117 = vunpack.c.l.b16 %v37
    %v118 = vunpack.c.l.b16 %v39
    %v119 = vunpack.c.l.b16 %v40
    %v120 = vpack.c.b16 %v117, %v116
    %v121 = vpack.c.b16 %v119, %v118
    %v124 = vunpack.c.l.b16 %v58
    %v125 = vunpack.c.l.b16 %v68
    %v126 = vunpack.c.l.b16 %v82
    %v127 = vunpack.c.l.b16 %v92
    %v128 = vpack.c.b16 %v125, %v124
    %v129 = vpack.c.b16 %v127, %v126
    %v132 = vunpack.c.l.b16 %v105
    %v133 = vunpack.c.l.b16 %v108
    %v134 = vunpack.c.l.b16 %v112
    %v135 = vunpack.c.l.b16 %v115
    %v136 = vpack.c.b16 %v133, %v132
    %v137 = vpack.c.b16 %v135, %v134
    %v140 = vld [vmem:[#allocation2] sm:$0xf]
    %v141 = vld [vmem:[#allocation2 + $0x4] sm:$0xf]
    %v142 = vld [vmem:[#allocation2 + $0x8] sm:$0xf]
    %v143 = vld [vmem:[#allocation2 + $0xc] sm:$0xf]
    %v144 = vld [vmem:[#allocation2 + $0x10] sm:$0xf]
    %v145 = vld [vmem:[#allocation2 + $0x14] sm:$0xf]
    %v146 = vld [vmem:[#allocation2 + $0x18] sm:$0xf]
    %v147 = vld [vmem:[#allocation2 + $0x1c] sm:$0xf]
    %v148 = vld [vmem:[#allocation2 + $0x20] sm:$0xf]
    %v149 = vld [vmem:[#allocation2 + $0x24] sm:$0xf]
    %v150 = vld [vmem:[#allocation2 + $0x28] sm:$0xf]
    %v151 = vld [vmem:[#allocation2 + $0x2c] sm:$0xf]
    %v152 = vld [vmem:[#allocation2 + $0x30] sm:$0xf]
    %v153 = vld [vmem:[#allocation2 + $0x34] sm:$0xf]
    %v154 = vld [vmem:[#allocation2 + $0x38] sm:$0xf]
    %v155 = vld [vmem:[#allocation2 + $0x3c] sm:$0xf]
    %v156 = vld [vmem:[#allocation2 + $0x40] sm:$0xf]
    %v157 = vld [vmem:[#allocation2 + $0x44] sm:$0xf]
    %v158 = vld [vmem:[#allocation2 + $0x48] sm:$0xf]
    %v159 = vld [vmem:[#allocation2 + $0x4c] sm:$0xf]
    %v160 = vld [vmem:[#allocation2 + $0x50] sm:$0xf]
    %v161 = vld [vmem:[#allocation2 + $0x54] sm:$0xf]
    %v162 = vld [vmem:[#allocation2 + $0x58] sm:$0xf]
    %v163 = vld [vmem:[#allocation2 + $0x5c] sm:$0xf]
    %v164 = vld [vmem:[#allocation2 + $0x60] sm:$0xf]
    %v165 = vld [vmem:[#allocation2 + $0x64] sm:$0xf]
    %v166 = vld [vmem:[#allocation2 + $0x68] sm:$0xf]
    %v167 = vld [vmem:[#allocation2 + $0x6c] sm:$0xf]
    %v168 = vld [vmem:[#allocation2 + $0x70] sm:$0xf]
    %v169 = vld [vmem:[#allocation2 + $0x74] sm:$0xf]
    %v170 = vld [vmem:[#allocation2 + $0x78] sm:$0xf]
    %v171 = vld [vmem:[#allocation2 + $0x7c] sm:$0xf]
    %v172 = vld [vmem:[#allocation2 + $0x80] sm:$0xf]
    %v173 = vld [vmem:[#allocation2 + $0x84] sm:$0xf]
    %v174 = vld [vmem:[#allocation2 + $0x88] sm:$0xf]
    %v175 = vld [vmem:[#allocation2 + $0x8c] sm:$0xf]
    %v176 = vld [vmem:[#allocation2 + $0x90] sm:$0xf]
    %v177 = vld [vmem:[#allocation2 + $0x94] sm:$0xf]
    %v178 = vld [vmem:[#allocation2 + $0x98] sm:$0xf]
    %v179 = vld [vmem:[#allocation2 + $0x9c] sm:$0xf]
    %v180 = vld [vmem:[#allocation2 + $0xa0] sm:$0xf]
    %v181 = vld [vmem:[#allocation2 + $0xa4] sm:$0xf]
    %v182 = vld [vmem:[#allocation2 + $0xa8] sm:$0xf]
    %v183 = vld [vmem:[#allocation2 + $0xac] sm:$0xf]
    %v184 = vld [vmem:[#allocation2 + $0xb0] sm:$0xf]
    %v185 = vld [vmem:[#allocation2 + $0xb4] sm:$0xf]
    %v186 = vld [vmem:[#allocation2 + $0xb8] sm:$0xf]
    %v187 = vld [vmem:[#allocation2 + $0xbc] sm:$0xf]
    %v236 = vunpack.c.l.b16 %v140
    %v237 = vunpack.c.l.b16 %v141
    %v238 = vunpack.c.l.b16 %v142
    %v239 = vunpack.c.l.b16 %v143
    %v240 = vunpack.c.l.b16 %v144
    %v241 = vunpack.c.l.b16 %v145
    %v242 = vunpack.c.l.b16 %v146
    %v243 = vunpack.c.l.b16 %v147
    %v244 = vunpack.c.l.b16 %v148
    %v245 = vunpack.c.l.b16 %v149
    %v246 = vunpack.c.l.b16 %v150
    %v247 = vunpack.c.l.b16 %v151
    %v248 = vunpack.c.l.b16 %v152
    %v249 = vunpack.c.l.b16 %v153
    %v250 = vunpack.c.l.b16 %v154
    %v251 = vunpack.c.l.b16 %v155
    %v252 = vunpack.c.l.b16 %v156
    %v253 = vunpack.c.l.b16 %v157
    %v254 = vunpack.c.l.b16 %v158
    %v255 = vunpack.c.l.b16 %v159
    %v256 = vunpack.c.l.b16 %v160
    %v257 = vunpack.c.l.b16 %v161
    %v258 = vunpack.c.l.b16 %v162
    %v259 = vunpack.c.l.b16 %v163
    %v260 = vunpack.c.l.b16 %v164
    %v261 = vunpack.c.l.b16 %v165
    %v262 = vunpack.c.l.b16 %v166
    %v263 = vunpack.c.l.b16 %v167
    %v264 = vunpack.c.l.b16 %v168
    %v265 = vunpack.c.l.b16 %v169
    %v266 = vunpack.c.l.b16 %v170
    %v267 = vunpack.c.l.b16 %v171
    %v268 = vunpack.c.l.b16 %v172
    %v269 = vunpack.c.l.b16 %v173
    %v270 = vunpack.c.l.b16 %v174
    %v271 = vunpack.c.l.b16 %v175
    %v272 = vunpack.c.l.b16 %v176
    %v273 = vunpack.c.l.b16 %v177
    %v274 = vunpack.c.l.b16 %v178
    %v275 = vunpack.c.l.b16 %v179
    %v276 = vunpack.c.l.b16 %v180
    %v277 = vunpack.c.l.b16 %v181
    %v278 = vunpack.c.l.b16 %v182
    %v279 = vunpack.c.l.b16 %v183
    %v280 = vunpack.c.l.b16 %v184
    %v281 = vunpack.c.l.b16 %v185
    %v282 = vunpack.c.l.b16 %v186
    %v283 = vunpack.c.l.b16 %v187
    %v284 = vpack.c.b16 %v237, %v236
    %v285 = vpack.c.b16 %v239, %v238
    %v286 = vpack.c.b16 %v241, %v240
    %v287 = vpack.c.b16 %v243, %v242
    %v288 = vpack.c.b16 %v245, %v244
    %v289 = vpack.c.b16 %v247, %v246
    %v290 = vpack.c.b16 %v249, %v248
    %v291 = vpack.c.b16 %v251, %v250
    %v292 = vpack.c.b16 %v253, %v252
    %v293 = vpack.c.b16 %v255, %v254
    %v294 = vpack.c.b16 %v257, %v256
    %v295 = vpack.c.b16 %v259, %v258
    %v296 = vpack.c.b16 %v261, %v260
    %v297 = vpack.c.b16 %v263, %v262
    %v298 = vpack.c.b16 %v265, %v264
    %v299 = vpack.c.b16 %v267, %v266
    %v300 = vpack.c.b16 %v269, %v268
    %v301 = vpack.c.b16 %v271, %v270
    %v302 = vpack.c.b16 %v273, %v272
    %v303 = vpack.c.b16 %v275, %v274
    %v304 = vpack.c.b16 %v277, %v276
    %v305 = vpack.c.b16 %v279, %v278
    %v306 = vpack.c.b16 %v281, %v280
    %v307 = vpack.c.b16 %v283, %v282
    %332 = vmatprep.subr.bf16.mxu0 0
    %333 = vmatpush1.bf16.msra.mxu0 %v284
    %334 = vmatprep.subr.bf16.mxu0 0
    %335 = vmatpush1.bf16.msra.mxu0 %v285
    %336 = vmatprep.subr.bf16.mxu0 0
    %337 = vmatpush1.bf16.msra.mxu0 %v286
    %338 = vmatprep.subr.bf16.mxu0 0
    %339 = vmatpush1.bf16.msra.mxu0 %v287
    %340 = vmatprep.subr.bf16.mxu0 0
    %341 = vmatpush1.bf16.msra.mxu0 %v288
    %342 = vmatprep.subr.bf16.mxu0 0
    %343 = vmatpush1.bf16.msra.mxu0 %v289
    %344 = vmatprep.subr.bf16.mxu0 0
    %345 = vmatpush1.bf16.msra.mxu0 %v290
    %346 = vmatprep.subr.bf16.mxu0 0
    %347 = vmatpush1.bf16.msra.mxu0 %v291
    %348 = vmatprep.subr.bf16.mxu0 0
    %349 = vmatpush1.bf16.msra.mxu0 %v292
    %350 = vmatprep.subr.bf16.mxu0 0
    %351 = vmatpush1.bf16.msra.mxu0 %v293
    %352 = vmatprep.subr.bf16.mxu0 0
    %353 = vmatpush1.bf16.msra.mxu0 %v294
    %354 = vmatprep.subr.bf16.mxu0 0
    %355 = vmatpush1.bf16.msra.mxu0 %v295
    %356 = vmatprep.subr.bf16.mxu0 0
    %357 = vmatpush1.bf16.msra.mxu0 %v296
    %358 = vmatprep.subr.bf16.mxu0 0
    %359 = vmatpush1.bf16.msra.mxu0 %v297
    %360 = vmatprep.subr.bf16.mxu0 0
    %361 = vmatpush1.bf16.msra.mxu0 %v298
    %362 = vmatprep.subr.bf16.mxu0 0
    %363 = vmatpush1.bf16.msra.mxu0 %v299
    %364 = vmatprep.mubr.bf16.mxu0 %v128
    %365 = vmatmul.mubr.bf16.gmra.mrb[0].mxu0 %v120
    %v366 = vpop.f32.mrb[0].mxu0
    %v367 = vadd.f32 0.0, %v366
    %v368 = vpop.f32.mrb[0].mxu0
    %v369 = vpop.f32.mrb[0].mxu0
    %v370 = vadd.f32 0.0, %v369
    %v371 = vpop.f32.mrb[0].mxu0
    %372 = vmatprep.mubr.bf16.mxu0 %v129
    %373 = vmatmul.mubr.bf16.gmra.mrb[0].mxu0 %v121
    %v374 = vpop.f32.mrb[0].mxu0
    %v375 = vadd.f32 0.0, %v374
    %v376 = vpop.f32.mrb[0].mxu0
    %v377 = vpop.f32.mrb[0].mxu0
    %v378 = vadd.f32 0.0, %v377
    %v379 = vpop.f32.mrb[0].mxu0
    %380 = vdwg.mxu0
    %381 = vmatprep.subr.bf16.mxu0 0
    %382 = vmatpush1.bf16.msra.mxu0 %v300
    %383 = vmatprep.subr.bf16.mxu0 0
    %384 = vmatpush1.bf16.msra.mxu0 %v301
    %385 = vmatprep.subr.bf16.mxu0 0
    %386 = vmatpush1.bf16.msra.mxu0 %v302
    %387 = vmatprep.subr.bf16.mxu0 0
    %388 = vmatpush1.bf16.msra.mxu0 %v303
    %389 = vmatprep.subr.bf16.mxu0 0
    %390 = vmatpush1.bf16.msra.mxu0 %v304
    %391 = vmatprep.subr.bf16.mxu0 0
    %392 = vmatpush1.bf16.msra.mxu0 %v305
    %393 = vmatprep.subr.bf16.mxu0 0
    %394 = vmatpush1.bf16.msra.mxu0 %v306
    %395 = vmatprep.subr.bf16.mxu0 0
    %396 = vmatpush1.bf16.msra.mxu0 %v307
    %397 = vmatprep.subr.bf16.mxu0 0
    %398 = vmatpush1.bf16.msra.mxu0 0
    %399 = vmatprep.subr.bf16.mxu0 0
    %400 = vmatpush1.bf16.msra.mxu0 0
    %401 = vmatprep.subr.bf16.mxu0 0
    %402 = vmatpush1.bf16.msra.mxu0 0
    %403 = vmatprep.subr.bf16.mxu0 0
    %404 = vmatpush1.bf16.msra.mxu0 0
    %405 = vmatprep.subr.bf16.mxu0 0
    %406 = vmatpush1.bf16.msra.mxu0 0
    %407 = vmatprep.subr.bf16.mxu0 0
    %408 = vmatpush1.bf16.msra.mxu0 0
    %409 = vmatprep.subr.bf16.mxu0 0
    %410 = vmatpush1.bf16.msra.mxu0 0
    %411 = vmatprep.subr.bf16.mxu0 0
    %412 = vmatpush1.bf16.msra.mxu0 0
    %413 = vmatprep.mubr.bf16.mxu0 0
    %414 = vmatmul.mubr.bf16.gmra.mrb[0].mxu0 %v136
    %v415 = vpop.f32.mrb[0].mxu0
    %v416 = vadd.f32 %v367, %v415
    %v417 = vpop.f32.mrb[0].mxu0
    %v418 = vpop.f32.mrb[0].mxu0
    %v419 = vadd.f32 %v370, %v418
    %v420 = vpop.f32.mrb[0].mxu0
    %421 = vmatprep.mubr.bf16.mxu0 0
    %422 = vmatmul.mubr.bf16.gmra.mrb[0].mxu0 %v137
    %v423 = vpop.f32.mrb[0].mxu0
    %v424 = vadd.f32 %v375, %v423
    %v425 = vpop.f32.mrb[0].mxu0
    %v426 = vpop.f32.mrb[0].mxu0
    %v427 = vadd.f32 %v378, %v426
    %v428 = vpop.f32.mrb[0].mxu0
    %429 = vdwg.mxu0
    %v430 = vpack.c.bf16 %v419, %v416
    %v431 = vpack.c.bf16 %v427, %v424
    %v434 = vunpack.c.l.b16 %v430
    %v435 = vunpack.c.h.b16 %v430
    %v436 = vunpack.c.l.b16 %v431
    %v437 = vunpack.c.h.b16 %v431
    %v438 = vpack.c.b16 %v434, %v434
    %v439 = vpack.c.b16 %v435, %v435
    %v440 = vpack.c.b16 %v436, %v436
    %v441 = vpack.c.b16 %v437, %v437
    %446 = vst [vmem:[#allocation5] sm:$0xf] %v438
    %447 = vst [vmem:[#allocation5 + $0x4] sm:$0xf] %v439
    %448 = vst [vmem:[#allocation5 + $0x8] sm:$0xf] %v440
    %449 = vst [vmem:[#allocation5 + $0xc] sm:$0xf] %v441
    %v450 = vadd.f32 %v416, %v419
    %v451 = vadd.f32 %v450, %v424
    %v452 = vadd.f32 %v451, %v427
    %v453 = vrot.slane %v452, 4
    %v454 = vadd.f32 %v452, %v453
    %v455 = vrot.slane %v454, 2
    %v456 = vadd.f32 %v454, %v455
    %v457 = vrot.slane %v456, 1
    %v458 = vadd.f32 %v456, %v457
    %v459 = vmul.f32 %v416, %v416
    %v460 = vmul.f32 %v419, %v419
    %v461 = vmul.f32 %v424, %v424
    %v462 = vmul.f32 %v427, %v427
    %v463 = vadd.f32 %v459, %v460
    %v464 = vadd.f32 %v463, %v461
    %v465 = vadd.f32 %v464, %v462
    %v466 = vrot.slane %v465, 4
    %v467 = vadd.f32 %v465, %v466
    %v468 = vrot.slane %v467, 2
    %v469 = vadd.f32 %v467, %v468
    %v470 = vrot.slane %v469, 1
    %v471 = vadd.f32 %v469, %v470
    %vm472 = vcmask 1040384
    %v473 = vsel %vm472, %v458, %v471
    %474 = vst [vmem:[#allocation6] sm:$0x3] %v473
    // Predicated region
    $region14: #{tpu_custom_call.1} parent=1 // pred_check
      _
    $region15: #{tpu_custom_call.1} parent=1 // pred_check_branch
      %476 = sbr.rel (0) target = $region17
    $region16: #{tpu_custom_call.1} parent=1 // pred_region
      %s478 = ssub.s32 256, 256
      %479 = vsyncadd [#allocation4], %s478
      %s480 = sshll.u32 [#allocation5], 4
      %s481 = int_to_ptr.vmem [resolvable:$true] %s480
      %486 = dma.vmem_to_hbm [thread:$0]  %s481, 256, %s2, [#allocation4], 64, 64, 4
    $region17: #{tpu_custom_call.1} parent=1 // pred_fallthru
      _
    // Predicated region
    $region18: #{tpu_custom_call.1} parent=1 // pred_check
      _
    $region19: #{tpu_custom_call.1} parent=1 // pred_check_branch
      %488 = sbr.rel (0) target = $region21
    $region20: #{tpu_custom_call.1} parent=1 // pred_region
      %s490 = ssub.s32 32, 32
      %491 = vsyncadd [#allocation7], %s490
      %s493 = sshll.u32 [#allocation6], 4
      %s494 = int_to_ptr.vmem [resolvable:$true] %s493
      %496 = dma.vmem_to_hbm [thread:$0]  %s494, 32, %s3, [#allocation7]
    $region21: #{tpu_custom_call.1} parent=1 // pred_fallthru
      _
    // Predicated region
    $region22: #{tpu_custom_call.1} parent=1 // pred_check
      _
    $region23: #{tpu_custom_call.1} parent=1 // pred_check_branch
      %498 = sbr.rel (0) target = $region25
    $region24: #{tpu_custom_call.1} parent=1 // pred_region
      %499 = dma.done [#allocation4], 256
    $region25: #{tpu_custom_call.1} parent=1 // pred_fallthru
      _
    // Predicated region
    $region26: #{tpu_custom_call.1} parent=1 // pred_check
      _
    $region27: #{tpu_custom_call.1} parent=1 // pred_check_branch
      %501 = sbr.rel (0) target = $region29
    $region28: #{tpu_custom_call.1} parent=1 // pred_region
      %502 = dma.done [#allocation7], 32
    $region29: #{tpu_custom_call.1} parent=1 // pred_fallthru
      _
    %503 = vsyncpa [#allocation3], 1
    %504 = vsyncpa [#allocation4], 1
    %505 = vsyncpa [#allocation7], 1

// kernel: tpu_custom_call.1
$region0: #{tpu_custom_call.1}
  #allocation0 [shape = 'u32[]', space=smem, size = 0x4, offset = 0x4, fixed_abs, tag = 'smem constant byte address 0x4 - core index']
  #allocation1 [shape = 'u32[144,128]{1,0:T(1,128)}', space=vmem, size = 0x12000, scoped, tag = 'internal scratch']
  %s0 = inlined_call_operand.vmem [shape: bf16[2,1,18,128], index: 0, kind: input, shape index: {}]
  %s1 = inlined_call_operand.hbm [shape: bf16[384,128], index: 1, kind: input, shape index: {}]
  %s2 = inlined_call_operand.hbm [shape: bf16[32,128], index: 2, kind: output, shape index: {0}]
  %s3 = inlined_call_operand.hbm [shape: f32[1,2,128], index: 3, kind: output, shape index: {1}]
  %4 = xla_tuple %s2, %s3
  %s5 = sld [smem:[#allocation0]]
  $region30: #{tpu_custom_call.1} parent=0
    _
  %s7 = ssub.s32 1, %s5
  %s8 = scalar_select 0, %s7, %s5
  $region1: #{tpu_custom_call.1} parent=0
    #allocation2 [shape = 'u8[98304]{0}', space=vmem, size = 0x18000, scoped, tag = 'input window, operand 1, single buffered']
    #allocation3 [shape = 's32[1]{0}', space=sflag, size = 0x4, scoped, tag = 'scoped memory for tpu_custom_call.1']
    #allocation4 [shape = 's32[1]{0}', space=sflag, size = 0x4, scoped, tag = 'scoped memory for tpu_custom_call.1']
    #allocation5 [shape = 'u8[8192]{0}', space=vmem, size = 0x2000, scoped, tag = 'output window, operand 0, single buffered']
    #allocation6 [shape = 'u8[1024]{0}', space=vmem, size = 0x400, scoped, tag = 'output window, operand 1, single buffered']
    #allocation7 [shape = 's32[1]{0}', space=sflag, size = 0x4, scoped, tag = 'scoped memory for tpu_custom_call.1']
    %9 = vsyncpa [#allocation3], 0
    %10 = vsyncpa [#allocation4], 0
    %11 = vsyncpa [#allocation7], 0
    // Predicated region
    $region2: #{tpu_custom_call.1} parent=1 // pred_check
      _
    $region3: #{tpu_custom_call.1} parent=1 // pred_check_branch
      %13 = sbr.rel (0) target = $region5
    $region4: #{tpu_custom_call.1} parent=1 // pred_region
      _
    $region5: #{tpu_custom_call.1} parent=1 // pred_fallthru
      _
    // Predicated region
    $region6: #{tpu_custom_call.1} parent=1 // pred_check
      _
    $region7: #{tpu_custom_call.1} parent=1 // pred_check_branch
      %15 = sbr.rel (0) target = $region9
    $region8: #{tpu_custom_call.1} parent=1 // pred_region
      %s17 = ssub.s32 3072, 3072
      %18 = vsyncadd [#allocation3], %s17
      %s19 = sshll.u32 [#allocation2], 4
      %s20 = int_to_ptr.vmem [resolvable:$true] %s19
      %25 = dma.hbm_to_vmem [thread:$0]  %s1, 3072, %s20, [#allocation3], 64, 64, 4
    $region9: #{tpu_custom_call.1} parent=1 // pred_fallthru
      _
    // Predicated region
    $region10: #{tpu_custom_call.1} parent=1 // pred_check
      _
    $region11: #{tpu_custom_call.1} parent=1 // pred_check_branch
      %27 = sbr.rel (0) target = $region13
    $region12: #{tpu_custom_call.1} parent=1 // pred_region
      %28 = dma.done [#allocation3], 3072
    $region13: #{tpu_custom_call.1} parent=1 // pred_fallthru
      _
    %v30 = vld [vmem:[%s0] sm:$0xf]
    %v31 = vld [vmem:[%s0 + $0x4] sm:$0xf]
    %v32 = vld [vmem:[%s0 + $0x8] sm:$0x1]
    %v33 = vld [vmem:[%s0 + $0xc] sm:$0xf]
    %v34 = vld [vmem:[%s0 + $0x10] sm:$0xf]
    %v35 = vld [vmem:[%s0 + $0x14] sm:$0x1]
    %v36 = vmax.bf16 %v30, 0
    %v37 = vmax.bf16 %v31, 0
    %v38 = vmax.bf16 %v32, 0
    %v39 = vmax.bf16 %v33, 0
    %v40 = vmax.bf16 %v34, 0
    %v41 = vmax.bf16 %v35, 0
    %vm42 = vsmask.f32 3328
    %vm43 = vsmask.f32 7440
    %vm44 = vmor %vm42, %vm43
    %v46 = vshrl.u32 %v36, 16
    %v48 = vrot.slane %v46, 4
    %v49 = vshll.u32 %v36, 16
    %v51 = vrot.slane %v49, 5
    %v52 = vor.u32 %v48, %v51
    %v53 = vrot.slane %v52, 4
    %v55 = vshll.u32 %v37, 16
    %v57 = vrot.slane %v55, 5
    %v58 = vsel %vm44, %v53, %v57
    %v59 = vshrl.u32 %v37, 16
    %v61 = vrot.slane %v59, 4
    %v62 = vor.u32 %v61, %v57
    %v63 = vrot.slane %v62, 4
    %v65 = vshll.u32 %v38, 16
    %v67 = vrot.slane %v65, 5
    %v68 = vsel %vm44, %v63, %v67
    %v70 = vshrl.u32 %v39, 16
    %v72 = vrot.slane %v70, 4
    %v73 = vshll.u32 %v39, 16
    %v75 = vrot.slane %v73, 5
    %v76 = vor.u32 %v72, %v75
    %v77 = vrot.slane %v76, 4
    %v79 = vshll.u32 %v40, 16
    %v81 = vrot.slane %v79, 5
    %v82 = vsel %vm44, %v77, %v81
    %v83 = vshrl.u32 %v40, 16
    %v85 = vrot.slane %v83, 4
    %v86 = vor.u32 %v85, %v81
    %v87 = vrot.slane %v86, 4
    %v89 = vshll.u32 %v41, 16
    %v91 = vrot.slane %v89, 5
    %v92 = vsel %vm44, %v87, %v91
    %vm99 = vcmask 1042432
    %vm100 = vcmask 1046532
    %vm101 = vmor %vm99, %vm100
    %v102 = vrot.slane %v36, 5
    %v103 = vrot.slane %v102, 4
    %v104 = vrot.slane %v37, 5
    %v105 = vsel %vm101, %v103, %v104
    %v106 = vrot.slane %v104, 4
    %v107 = vrot.slane %v38, 5
    %v108 = vsel %vm101, %v106, %v107
    %v109 = vrot.slane %v39, 5
    %v110 = vrot.slane %v109, 4
    %v111 = vrot.slane %v40, 5
    %v112 = vsel %vm101, %v110, %v111
    %v113 = vrot.slane %v111, 4
    %v114 = vrot.slane %v41, 5
    %v115 = vsel %vm101, %v113, %v114
    %v116 = vunpack.c.l.b16 %v36
    %v117 = vunpack.c.l.b16 %v37
    %v118 = vunpack.c.l.b16 %v39
    %v119 = vunpack.c.l.b16 %v40
    %v120 = vpack.c.b16 %v117, %v116
    %v121 = vpack.c.b16 %v119, %v118
    %v124 = vunpack.c.l.b16 %v58
    %v125 = vunpack.c.l.b16 %v68
    %v126 = vunpack.c.l.b16 %v82
    %v127 = vunpack.c.l.b16 %v92
    %v128 = vpack.c.b16 %v125, %v124
    %v129 = vpack.c.b16 %v127, %v126
    %v132 = vunpack.c.l.b16 %v105
    %v133 = vunpack.c.l.b16 %v108
    %v134 = vunpack.c.l.b16 %v112
    %v135 = vunpack.c.l.b16 %v115
    %v136 = vpack.c.b16 %v133, %v132
    %v137 = vpack.c.b16 %v135, %v134
    %v140 = vld [vmem:[#allocation2] sm:$0xf]
    %v141 = vld [vmem:[#allocation2 + $0x4] sm:$0xf]
    %v142 = vld [vmem:[#allocation2 + $0x8] sm:$0xf]
    %v143 = vld [vmem:[#allocation2 + $0xc] sm:$0xf]
    %v144 = vld [vmem:[#allocation2 + $0x10] sm:$0xf]
    %v145 = vld [vmem:[#allocation2 + $0x14] sm:$0xf]
    %v146 = vld [vmem:[#allocation2 + $0x18] sm:$0xf]
    %v147 = vld [vmem:[#allocation2 + $0x1c] sm:$0xf]
    %v148 = vld [vmem:[#allocation2 + $0x20] sm:$0xf]
    %v149 = vld [vmem:[#allocation2 + $0x24] sm:$0xf]
    %v150 = vld [vmem:[#allocation2 + $0x28] sm:$0xf]
    %v151 = vld [vmem:[#allocation2 + $0x2c] sm:$0xf]
    %v152 = vld [vmem:[#allocation2 + $0x30] sm:$0xf]
    %v153 = vld [vmem:[#allocation2 + $0x34] sm:$0xf]
    %v154 = vld [vmem:[#allocation2 + $0x38] sm:$0xf]
    %v155 = vld [vmem:[#allocation2 + $0x3c] sm:$0xf]
    %v156 = vld [vmem:[#allocation2 + $0x40] sm:$0xf]
    %v157 = vld [vmem:[#allocation2 + $0x44] sm:$0xf]
    %v158 = vld [vmem:[#allocation2 + $0x48] sm:$0xf]
    %v159 = vld [vmem:[#allocation2 + $0x4c] sm:$0xf]
    %v160 = vld [vmem:[#allocation2 + $0x50] sm:$0xf]
    %v161 = vld [vmem:[#allocation2 + $0x54] sm:$0xf]
    %v162 = vld [vmem:[#allocation2 + $0x58] sm:$0xf]
    %v163 = vld [vmem:[#allocation2 + $0x5c] sm:$0xf]
    %v164 = vld [vmem:[#allocation2 + $0x60] sm:$0xf]
    %v165 = vld [vmem:[#allocation2 + $0x64] sm:$0xf]
    %v166 = vld [vmem:[#allocation2 + $0x68] sm:$0xf]
    %v167 = vld [vmem:[#allocation2 + $0x6c] sm:$0xf]
    %v168 = vld [vmem:[#allocation2 + $0x70] sm:$0xf]
    %v169 = vld [vmem:[#allocation2 + $0x74] sm:$0xf]
    %v170 = vld [vmem:[#allocation2 + $0x78] sm:$0xf]
    %v171 = vld [vmem:[#allocation2 + $0x7c] sm:$0xf]
    %v172 = vld [vmem:[#allocation2 + $0x80] sm:$0xf]
    %v173 = vld [vmem:[#allocation2 + $0x84] sm:$0xf]
    %v174 = vld [vmem:[#allocation2 + $0x88] sm:$0xf]
    %v175 = vld [vmem:[#allocation2 + $0x8c] sm:$0xf]
    %v176 = vld [vmem:[#allocation2 + $0x90] sm:$0xf]
    %v177 = vld [vmem:[#allocation2 + $0x94] sm:$0xf]
    %v178 = vld [vmem:[#allocation2 + $0x98] sm:$0xf]
    %v179 = vld [vmem:[#allocation2 + $0x9c] sm:$0xf]
    %v180 = vld [vmem:[#allocation2 + $0xa0] sm:$0xf]
    %v181 = vld [vmem:[#allocation2 + $0xa4] sm:$0xf]
    %v182 = vld [vmem:[#allocation2 + $0xa8] sm:$0xf]
    %v183 = vld [vmem:[#allocation2 + $0xac] sm:$0xf]
    %v184 = vld [vmem:[#allocation2 + $0xb0] sm:$0xf]
    %v185 = vld [vmem:[#allocation2 + $0xb4] sm:$0xf]
    %v186 = vld [vmem:[#allocation2 + $0xb8] sm:$0xf]
    %v187 = vld [vmem:[#allocation2 + $0xbc] sm:$0xf]
    %v236 = vunpack.c.l.b16 %v140
    %v237 = vunpack.c.l.b16 %v141
    %v238 = vunpack.c.l.b16 %v142
    %v239 = vunpack.c.l.b16 %v143
    %v240 = vunpack.c.l.b16 %v144
    %v241 = vunpack.c.l.b16 %v145
    %v242 = vunpack.c.l.b16 %v146
    %v243 = vunpack.c.l.b16 %v147
    %v244 = vunpack.c.l.b16 %v148
    %v245 = vunpack.c.l.b16 %v149
    %v246 = vunpack.c.l.b16 %v150
    %v247 = vunpack.c.l.b16 %v151
    %v248 = vunpack.c.l.b16 %v152
    %v249 = vunpack.c.l.b16 %v153
    %v250 = vunpack.c.l.b16 %v154
    %v251 = vunpack.c.l.b16 %v155
    %v252 = vunpack.c.l.b16 %v156
    %v253 = vunpack.c.l.b16 %v157
    %v254 = vunpack.c.l.b16 %v158
    %v255 = vunpack.c.l.b16 %v159
    %v256 = vunpack.c.l.b16 %v160
    %v257 = vunpack.c.l.b16 %v161
    %v258 = vunpack.c.l.b16 %v162
    %v259 = vunpack.c.l.b16 %v163
    %v260 = vunpack.c.l.b16 %v164
    %v261 = vunpack.c.l.b16 %v165
    %v262 = vunpack.c.l.b16 %v166
    %v263 = vunpack.c.l.b16 %v167
    %v264 = vunpack.c.l.b16 %v168
    %v265 = vunpack.c.l.b16 %v169
    %v266 = vunpack.c.l.b16 %v170
    %v267 = vunpack.c.l.b16 %v171
    %v268 = vunpack.c.l.b16 %v172
    %v269 = vunpack.c.l.b16 %v173
    %v270 = vunpack.c.l.b16 %v174
    %v271 = vunpack.c.l.b16 %v175
    %v272 = vunpack.c.l.b16 %v176
    %v273 = vunpack.c.l.b16 %v177
    %v274 = vunpack.c.l.b16 %v178
    %v275 = vunpack.c.l.b16 %v179
    %v276 = vunpack.c.l.b16 %v180
    %v277 = vunpack.c.l.b16 %v181
    %v278 = vunpack.c.l.b16 %v182
    %v279 = vunpack.c.l.b16 %v183
    %v280 = vunpack.c.l.b16 %v184
    %v281 = vunpack.c.l.b16 %v185
    %v282 = vunpack.c.l.b16 %v186
    %v283 = vunpack.c.l.b16 %v187
    %v284 = vpack.c.b16 %v237, %v236
    %v285 = vpack.c.b16 %v239, %v238
    %v286 = vpack.c.b16 %v241, %v240
    %v287 = vpack.c.b16 %v243, %v242
    %v288 = vpack.c.b16 %v245, %v244
    %v289 = vpack.c.b16 %v247, %v246
    %v290 = vpack.c.b16 %v249, %v248
    %v291 = vpack.c.b16 %v251, %v250
    %v292 = vpack.c.b16 %v253, %v252
    %v293 = vpack.c.b16 %v255, %v254
    %v294 = vpack.c.b16 %v257, %v256
    %v295 = vpack.c.b16 %v259, %v258
    %v296 = vpack.c.b16 %v261, %v260
    %v297 = vpack.c.b16 %v263, %v262
    %v298 = vpack.c.b16 %v265, %v264
    %v299 = vpack.c.b16 %v267, %v266
    %v300 = vpack.c.b16 %v269, %v268
    %v301 = vpack.c.b16 %v271, %v270
    %v302 = vpack.c.b16 %v273, %v272
    %v303 = vpack.c.b16 %v275, %v274
    %v304 = vpack.c.b16 %v277, %v276
    %v305 = vpack.c.b16 %v279, %v278
    %v306 = vpack.c.b16 %v281, %v280
    %v307 = vpack.c.b16 %v283, %v282
    %332 = vmatprep.subr.bf16.mxu0 0
    %333 = vmatpush1.bf16.msra.mxu0 %v284
    %334 = vmatprep.subr.bf16.mxu0 0
    %335 = vmatpush1.bf16.msra.mxu0 %v285
    %336 = vmatprep.subr.bf16.mxu0 0
    %337 = vmatpush1.bf16.msra.mxu0 %v286
    %338 = vmatprep.subr.bf16.mxu0 0
    %339 = vmatpush1.bf16.msra.mxu0 %v287
    %340 = vmatprep.subr.bf16.mxu0 0
    %341 = vmatpush1.bf16.msra.mxu0 %v288
    %342 = vmatprep.subr.bf16.mxu0 0
    %343 = vmatpush1.bf16.msra.mxu0 %v289
    %344 = vmatprep.subr.bf16.mxu0 0
    %345 = vmatpush1.bf16.msra.mxu0 %v290
    %346 = vmatprep.subr.bf16.mxu0 0
    %347 = vmatpush1.bf16.msra.mxu0 %v291
    %348 = vmatprep.subr.bf16.mxu0 0
    %349 = vmatpush1.bf16.msra.mxu0 %v292
    %350 = vmatprep.subr.bf16.mxu0 0
    %351 = vmatpush1.bf16.msra.mxu0 %v293
    %352 = vmatprep.subr.bf16.mxu0 0
    %353 = vmatpush1.bf16.msra.mxu0 %v294
    %354 = vmatprep.subr.bf16.mxu0 0
    %355 = vmatpush1.bf16.msra.mxu0 %v295
    %356 = vmatprep.subr.bf16.mxu0 0
    %357 = vmatpush1.bf16.msra.mxu0 %v296
    %358 = vmatprep.subr.bf16.mxu0 0
    %359 = vmatpush1.bf16.msra.mxu0 %v297
    %360 = vmatprep.subr.bf16.mxu0 0
    %361 = vmatpush1.bf16.msra.mxu0 %v298
    %362 = vmatprep.subr.bf16.mxu0 0
    %363 = vmatpush1.bf16.msra.mxu0 %v299
    %364 = vmatprep.mubr.bf16.mxu0 %v128
    %365 = vmatmul.mubr.bf16.gmra.mrb[0].mxu0 %v120
    %v366 = vpop.f32.mrb[0].mxu0
    %v367 = vadd.f32 0.0, %v366
    %v368 = vpop.f32.mrb[0].mxu0
    %v369 = vpop.f32.mrb[0].mxu0
    %v370 = vadd.f32 0.0, %v369
    %v371 = vpop.f32.mrb[0].mxu0
    %372 = vmatprep.mubr.bf16.mxu0 %v129
    %373 = vmatmul.mubr.bf16.gmra.mrb[0].mxu0 %v121
    %v374 = vpop.f32.mrb[0].mxu0
    %v375 = vadd.f32 0.0, %v374
    %v376 = vpop.f32.mrb[0].mxu0
    %v377 = vpop.f32.mrb[0].mxu0
    %v378 = vadd.f32 0.0, %v377
    %v379 = vpop.f32.mrb[0].mxu0
    %380 = vdwg.mxu0
    %381 = vmatprep.subr.bf16.mxu0 0
    %382 = vmatpush1.bf16.msra.mxu0 %v300
    %383 = vmatprep.subr.bf16.mxu0 0
    %384 = vmatpush1.bf16.msra.mxu0 %v301
    %385 = vmatprep.subr.bf16.mxu0 0
    %386 = vmatpush1.bf16.msra.mxu0 %v302
    %387 = vmatprep.subr.bf16.mxu0 0
    %388 = vmatpush1.bf16.msra.mxu0 %v303
    %389 = vmatprep.subr.bf16.mxu0 0
    %390 = vmatpush1.bf16.msra.mxu0 %v304
    %391 = vmatprep.subr.bf16.mxu0 0
    %392 = vmatpush1.bf16.msra.mxu0 %v305
    %393 = vmatprep.subr.bf16.mxu0 0
    %394 = vmatpush1.bf16.msra.mxu0 %v306
    %395 = vmatprep.subr.bf16.mxu0 0
    %396 = vmatpush1.bf16.msra.mxu0 %v307
    %397 = vmatprep.subr.bf16.mxu0 0
    %398 = vmatpush1.bf16.msra.mxu0 0
    %399 = vmatprep.subr.bf16.mxu0 0
    %400 = vmatpush1.bf16.msra.mxu0 0
    %401 = vmatprep.subr.bf16.mxu0 0
    %402 = vmatpush1.bf16.msra.mxu0 0
    %403 = vmatprep.subr.bf16.mxu0 0
    %404 = vmatpush1.bf16.msra.mxu0 0
    %405 = vmatprep.subr.bf16.mxu0 0
    %406 = vmatpush1.bf16.msra.mxu0 0
    %407 = vmatprep.subr.bf16.mxu0 0
    %408 = vmatpush1.bf16.msra.mxu0 0
    %409 = vmatprep.subr.bf16.mxu0 0
    %410 = vmatpush1.bf16.msra.mxu0 0
    %411 = vmatprep.subr.bf16.mxu0 0
    %412 = vmatpush1.bf16.msra.mxu0 0
    %413 = vmatprep.mubr.bf16.mxu0 0
    %414 = vmatmul.mubr.bf16.gmra.mrb[0].mxu0 %v136
    %v415 = vpop.f32.mrb[0].mxu0
    %v416 = vadd.f32 %v367, %v415
    %v417 = vpop.f32.mrb[0].mxu0
    %v418 = vpop.f32.mrb[0].mxu0
    %v419 = vadd.f32 %v370, %v418
    %v420 = vpop.f32.mrb[0].mxu0
    %421 = vmatprep.mubr.bf16.mxu0 0
    %422 = vmatmul.mubr.bf16.gmra.mrb[0].mxu0 %v137
    %v423 = vpop.f32.mrb[0].mxu0
    %v424 = vadd.f32 %v375, %v423
    %v425 = vpop.f32.mrb[0].mxu0
    %v426 = vpop.f32.mrb[0].mxu0
    %v427 = vadd.f32 %v378, %v426
    %v428 = vpop.f32.mrb[0].mxu0
    %429 = vdwg.mxu0
    %v430 = vpack.c.bf16 %v419, %v416
    %v431 = vpack.c.bf16 %v427, %v424
    %v434 = vunpack.c.l.b16 %v430
    %v435 = vunpack.c.h.b16 %v430
    %v436 = vunpack.c.l.b16 %v431
    %v437 = vunpack.c.h.b16 %v431
    %v438 = vpack.c.b16 %v434, %v434
    %v439 = vpack.c.b16 %v435, %v435
    %v440 = vpack.c.b16 %v436, %v436
    %v441 = vpack.c.b16 %v437, %v437
    %446 = vst [vmem:[#allocation5] sm:$0xf] %v438
    %447 = vst [vmem:[#allocation5 + $0x4] sm:$0xf] %v439
    %448 = vst [vmem:[#allocation5 + $0x8] sm:$0xf] %v440
    %449 = vst [vmem:[#allocation5 + $0xc] sm:$0xf] %v441
    %v450 = vadd.f32 %v416, %v419
    %v451 = vadd.f32 %v450, %v424
    %v452 = vadd.f32 %v451, %v427
    %v453 = vrot.slane %v452, 4
    %v454 = vadd.f32 %v452, %v453
    %v455 = vrot.slane %v454, 2
    %v456 = vadd.f32 %v454, %v455
    %v457 = vrot.slane %v456, 1
    %v458 = vadd.f32 %v456, %v457
    %v459 = vmul.f32 %v416, %v416
    %v460 = vmul.f32 %v419, %v419
    %v461 = vmul.f32 %v424, %v424
    %v462 = vmul.f32 %v427, %v427
    %v463 = vadd.f32 %v459, %v460
    %v464 = vadd.f32 %v463, %v461
    %v465 = vadd.f32 %v464, %v462
    %v466 = vrot.slane %v465, 4
    %v467 = vadd.f32 %v465, %v466
    %v468 = vrot.slane %v467, 2
    %v469 = vadd.f32 %v467, %v468
    %v470 = vrot.slane %v469, 1
    %v471 = vadd.f32 %v469, %v470
    %vm472 = vcmask 1040384
    %v473 = vsel %vm472, %v458, %v471
    %474 = vst [vmem:[#allocation6] sm:$0x3] %v473
    // Predicated region
    $region14: #{tpu_custom_call.1} parent=1 // pred_check
      _
    $region15: #{tpu_custom_call.1} parent=1 // pred_check_branch
      %476 = sbr.rel (0) target = $region17
    $region16: #{tpu_custom_call.1} parent=1 // pred_region
      %s478 = ssub.s32 256, 256
      %479 = vsyncadd [#allocation4], %s478
      %s480 = sshll.u32 [#allocation5], 4
      %s481 = int_to_ptr.vmem [resolvable:$true] %s480
      %486 = dma.vmem_to_hbm [thread:$0]  %s481, 256, %s2, [#allocation4], 64, 64, 4
    $region17: #{tpu_custom_call.1} parent=1 // pred_fallthru
      _
    // Predicated region
    $region18: #{tpu_custom_call.1} parent=1 // pred_check
      _
    $region19: #{tpu_custom_call.1} parent=1 // pred_check_branch
      %488 = sbr.rel (0) target = $region21
    $region20: #{tpu_custom_call.1} parent=1 // pred_region
      %s490 = ssub.s32 32, 32
      %491 = vsyncadd [#allocation7], %s490
      %s493 = sshll.u32 [#allocation6], 4
      %s494 = int_to_ptr.vmem [resolvable:$true] %s493
      %496 = dma.vmem_to_hbm [thread:$0]  %s494, 32, %s3, [#allocation7]
    $region21: #{tpu_custom_call.1} parent=1 // pred_fallthru
      _
    // Predicated region
    $region22: #{tpu_custom_call.1} parent=1 // pred_check
      _
    $region23: #{tpu_custom_call.1} parent=1 // pred_check_branch
      %498 = sbr.rel (0) target = $region25
    $region24: #{tpu_custom_call.1} parent=1 // pred_region
      %499 = dma.done [#allocation4], 256
    $region25: #{tpu_custom_call.1} parent=1 // pred_fallthru
      _
    // Predicated region
    $region26: #{tpu_custom_call.1} parent=1 // pred_check
      _
    $region27: #{tpu_custom_call.1} parent=1 // pred_check_branch
      %501 = sbr.rel (0) target = $region29
    $region28: #{tpu_custom_call.1} parent=1 // pred_region
      %502 = dma.done [#allocation7], 32
    $region29: #{tpu_custom_call.1} parent=1 // pred_fallthru
      _
    %503 = vsyncpa [#allocation3], 1
    %504 = vsyncpa [#allocation4], 1
    %505 = vsyncpa [#allocation7], 1

</llo_original>
